<compile_context>
chip_gen: v7x
topology: tpu7x:2x2x1
jax: 0.10.0
libtpu: 0.0.40
codegen_flags: <defaults>
</compile_context>

<pallas_src>
import functools

import jax
import jax.numpy as jnp
from jax.experimental import pallas as pl
from jax.experimental.pallas import tpu as pltpu


def _scorer_kernel(user_ref, items_ref, w1u_ref, w1i_ref, b1_ref,
                   w2_ref, b2_ref, w3_ref, b3_ref, o_ref, *, tile_b, slate):
    """Fused split-W1 3-layer MLP over one block of `tile_b` batch rows.

    user_ref:  (tile_b, Du) f32        items_ref: (tile_b*slate, Dc) f32
    w*_ref:    bf16 weights            b*_ref:    f32 biases (1, H)
    o_ref:     (tile_b*slate, Dout) f32
    """
    h1 = w1u_ref.shape[-1]
    f32 = jnp.float32
    bf16 = jnp.bfloat16

    # User contribution to the first hidden layer, once per batch row
    # (bias b1 folded in so it is added exactly once).  bf16 operands, f32 acc.
    hu = jnp.dot(user_ref[...].astype(bf16), w1u_ref[...],
                 preferred_element_type=f32) + b1_ref[...]          # (tile_b, H1)

    # Item contribution for all tile_b*slate item rows.
    hi = jnp.dot(items_ref[...].astype(bf16), w1i_ref[...],
                 preferred_element_type=f32)                        # (tile_b*S, H1)

    # Implicit sublane broadcast of the per-batch-row user term over the slate:
    # view hi as (tile_b, S, H1) (free regrouping of 8-row sublane groups when
    # S == 8), add hu[:, None, :], ReLU, view back to 2-D for the next dot.
    h = jnp.maximum(hi.reshape(tile_b, slate, h1) + hu[:, None, :], 0.0)
    h = h.reshape(tile_b * slate, h1)

    h = jnp.maximum(
        jnp.dot(h.astype(bf16), w2_ref[...],
                preferred_element_type=f32) + b2_ref[...], 0.0)
    o = jnp.dot(h.astype(bf16), w3_ref[...],
                preferred_element_type=f32) + b3_ref[...]
    o_ref[...] = o.astype(o_ref.dtype)


def _choose_tiling(b, s):
    """Pick (tile_b, pad_b): batch rows per grid step and batch rows of padding.

    Targets >=8192 item rows per step (amortize the ~0.35 us/step fixed cost,
    roofline-sized DMAs) while:
      * preferring a tile that exactly divides B (no jnp.pad copy of items),
      * preferring >=2 grid steps so the "parallel" axis can shard across
        v7x's two TensorCores,
      * keeping tile_b a multiple of 8 (sublane alignment of the 2-D user
        block) unless tile_b == B (full-array block is always legal).
    """
    target_rows = 8192
    cap = max(1, target_rows // s)           # e.g. 1024 batch rows for slate=8
    best = None
    for tb in range(min(cap, b), 0, -1):
        if b % tb != 0:
            continue
        if tb % 8 != 0 and tb != b:
            continue
        if best is None:
            best = tb                         # largest legal exact divisor
        if b // tb >= 2:                      # prefer >=2 grid steps (v7x)
            best = tb
            break
    if best is not None:
        return best, 0
    # Large awkward batch with no usable divisor: fall back to padding.
    # TODO(synk): a ragged-tail second pallas_call would avoid the full pad copy.
    tile_b = max(8, (cap // 8) * 8)
    pad_b = (-b) % tile_b
    return tile_b, pad_b


def user_item_scorer_pallas(user, items2d, w1u, w1i, b1, w2, b2, w3, b3,
                            *, slate, tile_b):
    """Run the fused kernel.  user: (Bp, Du) f32; items2d: (Bp*S, Dc) f32."""
    b_pad, user_dim = user.shape
    n_rows, cand_dim = items2d.shape
    assert n_rows == b_pad * slate
    assert b_pad % tile_b == 0
    h1 = w1u.shape[1]
    h2 = w2.shape[1]
    out_dim = w3.shape[1]
    tile_rows = tile_b * slate
    grid = (b_pad // tile_b,)

    kernel = functools.partial(_scorer_kernel, tile_b=tile_b, slate=slate)
    return pl.pallas_call(
        kernel,
        out_shape=jax.ShapeDtypeStruct((n_rows, out_dim), jnp.float32),
        grid=grid,
        in_specs=[
            pl.BlockSpec((tile_b, user_dim), lambda i: (i, 0)),     # user rows (f32)
            pl.BlockSpec((tile_rows, cand_dim), lambda i: (i, 0)),  # item rows (f32)
            pl.BlockSpec((user_dim, h1), lambda i: (0, 0)),         # W1 user half (bf16)
            pl.BlockSpec((cand_dim, h1), lambda i: (0, 0)),         # W1 item half (bf16)
            pl.BlockSpec((1, h1), lambda i: (0, 0)),                # b1 (f32)
            pl.BlockSpec((h1, h2), lambda i: (0, 0)),               # W2 (bf16)
            pl.BlockSpec((1, h2), lambda i: (0, 0)),                # b2 (f32)
            pl.BlockSpec((h2, out_dim), lambda i: (0, 0)),          # W3 (bf16)
            pl.BlockSpec((1, out_dim), lambda i: (0, 0)),           # b3 (f32)
        ],
        out_specs=pl.BlockSpec((tile_rows, out_dim), lambda i: (i, 0)),
        compiler_params=pltpu.CompilerParams(
            dimension_semantics=("parallel",),
            vmem_limit_bytes=48 * 1024 * 1024),
    )(user, items2d, w1u, w1i, b1, w2, b2, w3, b3)


def init_params(key, user_dim, candidate_dim):
    """Deterministic PyTorch-style (uniform +/- 1/sqrt(fan_in)) init.

    MLP architecture (from MLP(in_dims, nb_classes=user_dim, layer_dims=[64,64])):
      Linear(F, 64) -> ReLU -> Linear(64, 64) -> ReLU -> Linear(64, user_dim)
    where F = user_dim + candidate_dim (see NOTE above).
    """
    f = user_dim + candidate_dim
    dims = [(f, 64), (64, 64), (64, user_dim)]
    params = []
    keys = jax.random.split(key, 2 * len(dims))
    for i, (ind, outd) in enumerate(dims):
        bound = 1.0 / jnp.sqrt(jnp.float32(ind))
        w = jax.random.uniform(keys[2 * i], (ind, outd), jnp.float32, -bound, bound)
        b = jax.random.uniform(keys[2 * i + 1], (1, outd), jnp.float32, -bound, bound)
        params += [w, b]
    return tuple(params)


@functools.partial(jax.jit, static_argnames=("slate_size", "tile_b"))
def user_item_scorer_forward(user, items, params, slate_size, tile_b=None):
    """Forward pass of UserItemScorer.

    user:  (B, user_dim)                   float32
    items: (B, slate_size, candidate_dim)  float32
    tile_b: optional explicit batch-row tile (must be a multiple of 8); default
            is the size/parallelism heuristic in _choose_tiling.
    Returns scores of shape squeeze((B, slate_size, user_dim)).
    """
    b, user_dim = user.shape
    _, s, cand_dim = items.shape
    assert s == slate_size

    w1, b1, w2, b2, w3, b3 = params
    # Split W1 so torch.cat((user, items), dim=-1) never has to be materialized
    # (user rows first, matching the concat order); weights to bf16 once.
    w1u = w1[:user_dim].astype(jnp.bfloat16)
    w1i = w1[user_dim:].astype(jnp.bfloat16)
    w2b = w2.astype(jnp.bfloat16)
    w3b = w3.astype(jnp.bfloat16)

    if tile_b is None:
        tile_b, pad_b = _choose_tiling(b, s)
    else:
        pad_b = (-b) % tile_b
    b_pad = b + pad_b
    if pad_b:
        user_p = jnp.pad(user, ((0, pad_b), (0, 0)))
        items_p = jnp.pad(items, ((0, pad_b), (0, 0), (0, 0)))
    else:
        user_p, items_p = user, items
    items2d = items_p.reshape(b_pad * s, cand_dim)     # free, contiguous reshape

    out = user_item_scorer_pallas(user_p, items2d, w1u, w1i, b1, w2b, b2, w3b, b3,
                                  slate=s, tile_b=tile_b)   # (b_pad*s, user_dim)

    scores = out[: b * s].reshape(b, s, user_dim)       # padded rows never leak
    return jnp.squeeze(scores)                          # torch .squeeze()


def reference_forward(user, items, params, matmul_dtype=jnp.float32):
    """Pure-JAX reference (concat formulation).  matmul_dtype=bfloat16 gives a
    precision-matched reference for the bf16-operand kernel."""
    b, user_dim = user.shape
    _, s, _ = items.shape
    user_rep = jnp.broadcast_to(user[:, None, :], (b, s, user_dim))
    feat = jnp.concatenate([user_rep, items], axis=-1)
    w1, b1, w2, b2, w3, b3 = params

    def lin(x, w, bias):
        return jnp.dot(x.astype(matmul_dtype), w.astype(matmul_dtype),
                       preferred_element_type=jnp.float32) + bias

    h = jnp.maximum(lin(feat, w1, b1), 0.0)
    h = jnp.maximum(lin(h, w2, b2), 0.0)
    return jnp.squeeze(lin(h, w3, b3))


if __name__ == "__main__":
    # Small shapes consistent with the module.
    batch = 2
    user_dim = 32
    candidate_dim = 16
    slate_size = 8

    key = jax.random.PRNGKey(0)
    k_user, k_items, k_params, k_u2, k_i2, k_u3, k_i3 = jax.random.split(key, 7)

    user = jax.random.normal(k_user, (batch, user_dim), jnp.float32)
    items = jax.random.normal(k_items, (batch, slate_size, candidate_dim), jnp.float32)
    params = init_params(k_params, user_dim, candidate_dim)

    scores = jax.block_until_ready(
        user_item_scorer_forward(user, items, params, slate_size))
    assert scores.shape == (batch, slate_size, user_dim), scores.shape
    ref_bf = reference_forward(user, items, params, jnp.bfloat16)   # matched precision
    ref_f32 = reference_forward(user, items, params, jnp.float32)   # full precision
    assert jnp.allclose(scores, ref_bf, atol=2e-3, rtol=2e-3), "mismatch vs bf16 ref"
    assert jnp.allclose(scores, ref_f32, atol=2e-2, rtol=2e-2), "mismatch vs f32 ref"

    # Multi-step grid path (forced small tile so the pipeline loop is exercised).
    b2 = 64
    user2 = jax.random.normal(k_u2, (b2, user_dim), jnp.float32)
    items2 = jax.random.normal(k_i2, (b2, slate_size, candidate_dim), jnp.float32)
    s2 = jax.block_until_ready(
        user_item_scorer_forward(user2, items2, params, slate_size, tile_b=16))
    assert s2.shape == (b2, slate_size, user_dim), s2.shape
    assert jnp.allclose(s2, reference_forward(user2, items2, params, jnp.bfloat16),
                        atol=2e-3, rtol=2e-3), "mismatch (multi-step grid)"

    # Awkward batch (not a multiple of 8): heuristic picks a single full-batch
    # block — exercises the no-padding, tile_b == B path.
    b3 = 300
    user3 = jax.random.normal(k_u3, (b3, user_dim), jnp.float32)
    items3 = jax.random.normal(k_i3, (b3, slate_size, candidate_dim), jnp.float32)
    s3 = jax.block_until_ready(
        user_item_scorer_forward(user3, items3, params, slate_size))
    assert s3.shape == (b3, slate_size, user_dim), s3.shape
    assert jnp.allclose(s3, reference_forward(user3, items3, params, jnp.bfloat16),
                        atol=2e-3, rtol=2e-3), "mismatch (awkward batch)"

    print("KERNEL_OK")
</pallas_src>

<mosaic_0001>
module attributes {stable_mosaic.version = 11 : i64} {
  func.func @_scorer_kernel(%arg0: i32, %arg1: memref<2x32xf32, #tpu.memory_space<vmem>>, %arg2: memref<16x16xf32, #tpu.memory_space<vmem>>, %arg3: memref<32x64xbf16, #tpu.memory_space<vmem>>, %arg4: memref<16x64xbf16, #tpu.memory_space<vmem>>, %arg5: memref<1x64xf32, #tpu.memory_space<vmem>>, %arg6: memref<64x64xbf16, #tpu.memory_space<vmem>>, %arg7: memref<1x64xf32, #tpu.memory_space<vmem>>, %arg8: memref<64x32xbf16, #tpu.memory_space<vmem>>, %arg9: memref<1x32xf32, #tpu.memory_space<vmem>>, %arg10: memref<16x32xf32, #tpu.memory_space<vmem>>) attributes {dimension_semantics = [#tpu.dimension_semantics<parallel>], iteration_bounds = array<i64: 1>, scalar_prefetch = 0 : i64, scratch_operands = 0 : i64, tpu.core_type = #tpu.core_type<tc>, window_params = [{transform_indices = @transform_0, window_bounds = array<i64: 2, 32>}, {transform_indices = @transform_1, window_bounds = array<i64: 16, 16>}, {pipeline_mode = #tpu.pipeline_mode<synchronous>, transform_indices = @transform_2, window_bounds = array<i64: 32, 64>}, {pipeline_mode = #tpu.pipeline_mode<synchronous>, transform_indices = @transform_3, window_bounds = array<i64: 16, 64>}, {pipeline_mode = #tpu.pipeline_mode<synchronous>, transform_indices = @transform_4, window_bounds = array<i64: 1, 64>}, {pipeline_mode = #tpu.pipeline_mode<synchronous>, transform_indices = @transform_5, window_bounds = array<i64: 64, 64>}, {pipeline_mode = #tpu.pipeline_mode<synchronous>, transform_indices = @transform_6, window_bounds = array<i64: 1, 64>}, {pipeline_mode = #tpu.pipeline_mode<synchronous>, transform_indices = @transform_7, window_bounds = array<i64: 64, 32>}, {pipeline_mode = #tpu.pipeline_mode<synchronous>, transform_indices = @transform_8, window_bounds = array<i64: 1, 32>}, {transform_indices = @transform_9, window_bounds = array<i64: 16, 32>}]} {
    %c0 = arith.constant 0 : index
    %c0_0 = arith.constant 0 : index
    %0 = vector.load %arg1[%c0, %c0_0] : memref<2x32xf32, #tpu.memory_space<vmem>>, vector<2x32xf32>
    %1 = arith.truncf %0 : vector<2x32xf32> to vector<2x32xbf16>
    %c0_1 = arith.constant 0 : index
    %c0_2 = arith.constant 0 : index
    %2 = vector.load %arg3[%c0_1, %c0_2] : memref<32x64xbf16, #tpu.memory_space<vmem>>, vector<32x64xbf16>
    %cst = arith.constant dense<0.000000e+00> : vector<2x64xf32>
    %3 = tpu.matmul %1, %2, %cst {dimension_numbers = #tpu.dot_dimension_numbers<[1], [0], [0], [1], [0, 0, 1, 1], [], []>} : vector<2x32xbf16>, vector<32x64xbf16>, vector<2x64xf32> -> vector<2x64xf32>
    %c0_3 = arith.constant 0 : index
    %c0_4 = arith.constant 0 : index
    %4 = vector.load %arg5[%c0_3, %c0_4] : memref<1x64xf32, #tpu.memory_space<vmem>>, vector<1x64xf32>
    %5 = vector.broadcast %4 : vector<1x64xf32> to vector<2x64xf32>
    %6 = arith.addf %3, %5 : vector<2x64xf32>
    %c0_5 = arith.constant 0 : index
    %c0_6 = arith.constant 0 : index
    %7 = vector.load %arg2[%c0_5, %c0_6] : memref<16x16xf32, #tpu.memory_space<vmem>>, vector<16x16xf32>
    %8 = arith.truncf %7 : vector<16x16xf32> to vector<16x16xbf16>
    %c0_7 = arith.constant 0 : index
    %c0_8 = arith.constant 0 : index
    %9 = vector.load %arg4[%c0_7, %c0_8] : memref<16x64xbf16, #tpu.memory_space<vmem>>, vector<16x64xbf16>
    %cst_9 = arith.constant dense<0.000000e+00> : vector<16x64xf32>
    %10 = tpu.matmul %8, %9, %cst_9 {dimension_numbers = #tpu.dot_dimension_numbers<[1], [0], [0], [1], [0, 0, 1, 1], [], []>} : vector<16x16xbf16>, vector<16x64xbf16>, vector<16x64xf32> -> vector<16x64xf32>
    %11 = vector.shape_cast %10 : vector<16x64xf32> to vector<2x8x64xf32>
    %12 = vector.shape_cast %6 : vector<2x64xf32> to vector<2x1x64xf32>
    %13 = vector.broadcast %12 : vector<2x1x64xf32> to vector<2x8x64xf32>
    %14 = arith.addf %11, %13 : vector<2x8x64xf32>
    %cst_10 = arith.constant 0.000000e+00 : f32
    %15 = vector.broadcast %cst_10 : f32 to vector<2x8x64xf32>
    %16 = arith.maximumf %14, %15 : vector<2x8x64xf32>
    %17 = vector.shape_cast %16 : vector<2x8x64xf32> to vector<16x64xf32>
    %18 = arith.truncf %17 : vector<16x64xf32> to vector<16x64xbf16>
    %c0_11 = arith.constant 0 : index
    %c0_12 = arith.constant 0 : index
    %19 = vector.load %arg6[%c0_11, %c0_12] : memref<64x64xbf16, #tpu.memory_space<vmem>>, vector<64x64xbf16>
    %cst_13 = arith.constant dense<0.000000e+00> : vector<16x64xf32>
    %20 = tpu.matmul %18, %19, %cst_13 {dimension_numbers = #tpu.dot_dimension_numbers<[1], [0], [0], [1], [0, 0, 1, 1], [], []>} : vector<16x64xbf16>, vector<64x64xbf16>, vector<16x64xf32> -> vector<16x64xf32>
    %c0_14 = arith.constant 0 : index
    %c0_15 = arith.constant 0 : index
    %21 = vector.load %arg7[%c0_14, %c0_15] : memref<1x64xf32, #tpu.memory_space<vmem>>, vector<1x64xf32>
    %22 = vector.broadcast %21 : vector<1x64xf32> to vector<16x64xf32>
    %23 = arith.addf %20, %22 : vector<16x64xf32>
    %cst_16 = arith.constant 0.000000e+00 : f32
    %24 = vector.broadcast %cst_16 : f32 to vector<16x64xf32>
    %25 = arith.maximumf %23, %24 : vector<16x64xf32>
    %26 = arith.truncf %25 : vector<16x64xf32> to vector<16x64xbf16>
    %c0_17 = arith.constant 0 : index
    %c0_18 = arith.constant 0 : index
    %27 = vector.load %arg8[%c0_17, %c0_18] : memref<64x32xbf16, #tpu.memory_space<vmem>>, vector<64x32xbf16>
    %cst_19 = arith.constant dense<0.000000e+00> : vector<16x32xf32>
    %28 = tpu.matmul %26, %27, %cst_19 {dimension_numbers = #tpu.dot_dimension_numbers<[1], [0], [0], [1], [0, 0, 1, 1], [], []>} : vector<16x64xbf16>, vector<64x32xbf16>, vector<16x32xf32> -> vector<16x32xf32>
    %c0_20 = arith.constant 0 : index
    %c0_21 = arith.constant 0 : index
    %29 = vector.load %arg9[%c0_20, %c0_21] : memref<1x32xf32, #tpu.memory_space<vmem>>, vector<1x32xf32>
    %30 = vector.broadcast %29 : vector<1x32xf32> to vector<16x32xf32>
    %31 = arith.addf %28, %30 : vector<16x32xf32>
    %c0_22 = arith.constant 0 : index
    %c0_23 = arith.constant 0 : index
    %32 = vector.load %arg10[%c0_22, %c0_23] : memref<16x32xf32, #tpu.memory_space<vmem>>, vector<16x32xf32>
    tpu.vector_store %arg10[%c0_22, %c0_23], %31 {strides = array<i32>} : memref<16x32xf32, #tpu.memory_space<vmem>>, vector<16x32xf32>,
    return
  }
  func.func @transform_0(%arg0: i32) -> (i32, i32) {
    %c0_i32 = arith.constant 0 : i32
    %c0_i32_0 = arith.constant 0 : i32
    return %arg0, %c0_i32 : i32, i32
  }
  func.func @transform_1(%arg0: i32) -> (i32, i32) {
    %c0_i32 = arith.constant 0 : i32
    %c0_i32_0 = arith.constant 0 : i32
    return %arg0, %c0_i32 : i32, i32
  }
  func.func @transform_2(%arg0: i32) -> (i32, i32) {
    %c0_i32 = arith.constant 0 : i32
    %c0_i32_0 = arith.constant 0 : i32
    %c0_i32_1 = arith.constant 0 : i32
    return %c0_i32, %c0_i32_0 : i32, i32
  }
  func.func @transform_3(%arg0: i32) -> (i32, i32) {
    %c0_i32 = arith.constant 0 : i32
    %c0_i32_0 = arith.constant 0 : i32
    %c0_i32_1 = arith.constant 0 : i32
    return %c0_i32, %c0_i32_0 : i32, i32
  }
  func.func @transform_4(%arg0: i32) -> (i32, i32) {
    %c0_i32 = arith.constant 0 : i32
    %c0_i32_0 = arith.constant 0 : i32
    %c0_i32_1 = arith.constant 0 : i32
    return %c0_i32, %c0_i32_0 : i32, i32
  }
  func.func @transform_5(%arg0: i32) -> (i32, i32) {
    %c0_i32 = arith.constant 0 : i32
    %c0_i32_0 = arith.constant 0 : i32
    %c0_i32_1 = arith.constant 0 : i32
    return %c0_i32, %c0_i32_0 : i32, i32
  }
  func.func @transform_6(%arg0: i32) -> (i32, i32) {
    %c0_i32 = arith.constant 0 : i32
    %c0_i32_0 = arith.constant 0 : i32
    %c0_i32_1 = arith.constant 0 : i32
    return %c0_i32, %c0_i32_0 : i32, i32
  }
  func.func @transform_7(%arg0: i32) -> (i32, i32) {
    %c0_i32 = arith.constant 0 : i32
    %c0_i32_0 = arith.constant 0 : i32
    %c0_i32_1 = arith.constant 0 : i32
    return %c0_i32, %c0_i32_0 : i32, i32
  }
  func.func @transform_8(%arg0: i32) -> (i32, i32) {
    %c0_i32 = arith.constant 0 : i32
    %c0_i32_0 = arith.constant 0 : i32
    %c0_i32_1 = arith.constant 0 : i32
    return %c0_i32, %c0_i32_0 : i32, i32
  }
  func.func @transform_9(%arg0: i32) -> (i32, i32) {
    %c0_i32 = arith.constant 0 : i32
    %c0_i32_0 = arith.constant 0 : i32
    return %arg0, %c0_i32 : i32, i32
  }
}

</mosaic_0001>

<llo_original>
// kernel: user_item_scorer_forward.1
$region0: #{user_item_scorer_forward.1}
  #allocation0 [shape = 'u32[]', space=smem, size = 0x4, offset = 0x4, fixed_abs, tag = 'smem constant byte address 0x4 - core index']
  #allocation1 [shape = 'u32[144,128]{1,0:T(1,128)}', space=vmem, size = 0x12000, scoped, tag = 'internal scratch']
  %s0 = inlined_call_operand.vmem [shape: f32[2,32], index: 0, kind: input, shape index: {}]
  %s1 = inlined_call_operand.vmem [shape: f32[16,16], index: 1, kind: input, shape index: {}]
  %s2 = inlined_call_operand.vmem [shape: bf16[32,64], index: 2, kind: input, shape index: {}]
  %s3 = inlined_call_operand.vmem [shape: bf16[16,64], index: 3, kind: input, shape index: {}]
  %s4 = inlined_call_operand.vmem [shape: f32[1,64], index: 4, kind: input, shape index: {}]
  %s5 = inlined_call_operand.vmem [shape: bf16[64,64], index: 5, kind: input, shape index: {}]
  %s6 = inlined_call_operand.vmem [shape: f32[1,64], index: 6, kind: input, shape index: {}]
  %s7 = inlined_call_operand.vmem [shape: bf16[64,32], index: 7, kind: input, shape index: {}]
  %s8 = inlined_call_operand.vmem [shape: f32[1,32], index: 8, kind: input, shape index: {}]
  %s9 = inlined_call_operand.hbm [shape: f32[16,32], index: 9, kind: output, shape index: {}]
  %s10 = sld [smem:[#allocation0]]
  $region46: #{user_item_scorer_forward.1} parent=0
    _
  %s12 = ssub.s32 1, %s10
  %s13 = scalar_select 0, %s12, %s10
  $region1: #{user_item_scorer_forward.1} parent=0
    #allocation2 [shape = 'u8[8192]{0}', space=vmem, size = 0x2000, scoped, tag = 'output window, operand 0, single buffered']
    #allocation3 [shape = 's32[1]{0}', space=sflag, size = 0x4, scoped, tag = 'scoped memory for user_item_scorer_forward.1']
    %14 = vsyncpa [#allocation3], 0
    // Predicated region
    $region2: #{user_item_scorer_forward.1} parent=1 // pred_check
      _
    $region3: #{user_item_scorer_forward.1} parent=1 // pred_check_branch
      %16 = sbr.rel (0) target = $region5
    $region4: #{user_item_scorer_forward.1} parent=1 // pred_region
      _
    $region5: #{user_item_scorer_forward.1} parent=1 // pred_fallthru
      _
    // Predicated region
    $region6: #{user_item_scorer_forward.1} parent=1 // pred_check
      _
    $region7: #{user_item_scorer_forward.1} parent=1 // pred_check_branch
      %18 = sbr.rel (0) target = $region9
    $region8: #{user_item_scorer_forward.1} parent=1 // pred_region
      _
    $region9: #{user_item_scorer_forward.1} parent=1 // pred_fallthru
      _
    // Predicated region
    $region10: #{user_item_scorer_forward.1} parent=1 // pred_check
      _
    $region11: #{user_item_scorer_forward.1} parent=1 // pred_check_branch
      %20 = sbr.rel (0) target = $region13
    $region12: #{user_item_scorer_forward.1} parent=1 // pred_region
      _
    $region13: #{user_item_scorer_forward.1} parent=1 // pred_fallthru
      _
    // Predicated region
    $region14: #{user_item_scorer_forward.1} parent=1 // pred_check
      _
    $region15: #{user_item_scorer_forward.1} parent=1 // pred_check_branch
      %22 = sbr.rel (0) target = $region17
    $region16: #{user_item_scorer_forward.1} parent=1 // pred_region
      _
    $region17: #{user_item_scorer_forward.1} parent=1 // pred_fallthru
      _
    // Predicated region
    $region18: #{user_item_scorer_forward.1} parent=1 // pred_check
      _
    $region19: #{user_item_scorer_forward.1} parent=1 // pred_check_branch
      %24 = sbr.rel (0) target = $region21
    $region20: #{user_item_scorer_forward.1} parent=1 // pred_region
      _
    $region21: #{user_item_scorer_forward.1} parent=1 // pred_fallthru
      _
    // Predicated region
    $region22: #{user_item_scorer_forward.1} parent=1 // pred_check
      _
    $region23: #{user_item_scorer_forward.1} parent=1 // pred_check_branch
      %26 = sbr.rel (0) target = $region25
    $region24: #{user_item_scorer_forward.1} parent=1 // pred_region
      _
    $region25: #{user_item_scorer_forward.1} parent=1 // pred_fallthru
      _
    // Predicated region
    $region26: #{user_item_scorer_forward.1} parent=1 // pred_check
      _
    $region27: #{user_item_scorer_forward.1} parent=1 // pred_check_branch
      %28 = sbr.rel (0) target = $region29
    $region28: #{user_item_scorer_forward.1} parent=1 // pred_region
      _
    $region29: #{user_item_scorer_forward.1} parent=1 // pred_fallthru
      _
    // Predicated region
    $region30: #{user_item_scorer_forward.1} parent=1 // pred_check
      _
    $region31: #{user_item_scorer_forward.1} parent=1 // pred_check_branch
      %30 = sbr.rel (0) target = $region33
    $region32: #{user_item_scorer_forward.1} parent=1 // pred_region
      _
    $region33: #{user_item_scorer_forward.1} parent=1 // pred_fallthru
      _
    // Predicated region
    $region34: #{user_item_scorer_forward.1} parent=1 // pred_check
      _
    $region35: #{user_item_scorer_forward.1} parent=1 // pred_check_branch
      %32 = sbr.rel (0) target = $region37
    $region36: #{user_item_scorer_forward.1} parent=1 // pred_region
      _
    $region37: #{user_item_scorer_forward.1} parent=1 // pred_fallthru
      _
    %v34 = vld [vmem:[%s0] sm:$0x3]
    %v35 = vpack.c.bf16 %v34, %v34
    %v36 = vld [vmem:[%s2] sm:$0xf]
    %v37 = vld [vmem:[%s2 + $0x4] sm:$0xf]
    %v38 = vld [vmem:[%s2 + $0x8] sm:$0xf]
    %v39 = vld [vmem:[%s2 + $0xc] sm:$0xf]
    %v40 = vld [vmem:[%s4] sm:$0x1]
    %v42 = vlaneseq
    %v43 = vshrl.u32 %v42, 7
    %v44 = vsub.s32 0, %v43
    %v45 = vrot.slane %v40, %v44
    %v51 = vunpack.c.l.b16 %v36
    %v52 = vunpack.c.l.b16 %v37
    %v53 = vunpack.c.l.b16 %v38
    %v54 = vunpack.c.l.b16 %v39
    %v55 = vpack.c.b16 %v52, %v51
    %v56 = vpack.c.b16 %v54, %v53
    %vm59 = vcmask 261120
    %v61 = vsel %vm59, %v35, 0
    %63 = vmatprep.subr.bf16.mxu0 0
    %64 = vmatpush1.bf16.msra.mxu0 %v55
    %65 = vmatprep.subr.bf16.mxu0 0
    %66 = vmatpush1.bf16.msra.mxu0 %v56
    %67 = vmatprep.subr.bf16.mxu0 0
    %68 = vmatpush1.bf16.msra.mxu0 0
    %69 = vmatprep.subr.bf16.mxu0 0
    %70 = vmatpush1.bf16.msra.mxu0 0
    %71 = vmatprep.subr.bf16.mxu0 0
    %72 = vmatpush1.bf16.msra.mxu0 0
    %73 = vmatprep.subr.bf16.mxu0 0
    %74 = vmatpush1.bf16.msra.mxu0 0
    %75 = vmatprep.subr.bf16.mxu0 0
    %76 = vmatpush1.bf16.msra.mxu0 0
    %77 = vmatprep.subr.bf16.mxu0 0
    %78 = vmatpush1.bf16.msra.mxu0 0
    %79 = vmatprep.subr.bf16.mxu0 0
    %80 = vmatpush1.bf16.msra.mxu0 0
    %81 = vmatprep.subr.bf16.mxu0 0
    %82 = vmatpush1.bf16.msra.mxu0 0
    %83 = vmatprep.subr.bf16.mxu0 0
    %84 = vmatpush1.bf16.msra.mxu0 0
    %85 = vmatprep.subr.bf16.mxu0 0
    %86 = vmatpush1.bf16.msra.mxu0 0
    %87 = vmatprep.subr.bf16.mxu0 0
    %88 = vmatpush1.bf16.msra.mxu0 0
    %89 = vmatprep.subr.bf16.mxu0 0
    %90 = vmatpush1.bf16.msra.mxu0 0
    %91 = vmatprep.subr.bf16.mxu0 0
    %92 = vmatpush1.bf16.msra.mxu0 0
    %93 = vmatprep.subr.bf16.mxu0 0
    %94 = vmatpush1.bf16.msra.mxu0 0
    %95 = vmatprep.mubr.bf16.mxu0 0
    %96 = vmatmul.mubr.bf16.gmra.mrb[0].mxu0 %v61
    %v97 = vpop.f32.mrb[0].mxu0
    %v98 = vadd.f32 %v45, %v97
    %v99 = vpop.f32.mrb[0].mxu0
    %v100 = vpop.f32.mrb[0].mxu0
    %v101 = vpop.f32.mrb[0].mxu0
    %102 = vdwg.mxu0
    %v103 = vld [vmem:[%s1] sm:$0xff]
    %v104 = vld [vmem:[%s1 + $0x8] sm:$0xff]
    %v105 = vpack.c.bf16 %v104, %v103
    %v106 = vld [vmem:[%s3] sm:$0xf]
    %v107 = vld [vmem:[%s3 + $0x4] sm:$0xf]
    %v110 = vunpack.c.l.b16 %v106
    %v111 = vunpack.c.l.b16 %v107
    %v112 = vpack.c.b16 %v111, %v110
    %vm114 = vcmask 130048
    %v116 = vsel %vm114, %v105, 0
    %118 = vmatprep.subr.bf16.mxu0 0
    %119 = vmatpush1.bf16.msra.mxu0 %v112
    %120 = vmatprep.subr.bf16.mxu0 0
    %121 = vmatpush1.bf16.msra.mxu0 0
    %122 = vmatprep.subr.bf16.mxu0 0
    %123 = vmatpush1.bf16.msra.mxu0 0
    %124 = vmatprep.subr.bf16.mxu0 0
    %125 = vmatpush1.bf16.msra.mxu0 0
    %126 = vmatprep.subr.bf16.mxu0 0
    %127 = vmatpush1.bf16.msra.mxu0 0
    %128 = vmatprep.subr.bf16.mxu0 0
    %129 = vmatpush1.bf16.msra.mxu0 0
    %130 = vmatprep.subr.bf16.mxu0 0
    %131 = vmatpush1.bf16.msra.mxu0 0
    %132 = vmatprep.subr.bf16.mxu0 0
    %133 = vmatpush1.bf16.msra.mxu0 0
    %134 = vmatprep.subr.bf16.mxu0 0
    %135 = vmatpush1.bf16.msra.mxu0 0
    %136 = vmatprep.subr.bf16.mxu0 0
    %137 = vmatpush1.bf16.msra.mxu0 0
    %138 = vmatprep.subr.bf16.mxu0 0
    %139 = vmatpush1.bf16.msra.mxu0 0
    %140 = vmatprep.subr.bf16.mxu0 0
    %141 = vmatpush1.bf16.msra.mxu0 0
    %142 = vmatprep.subr.bf16.mxu0 0
    %143 = vmatpush1.bf16.msra.mxu0 0
    %144 = vmatprep.subr.bf16.mxu0 0
    %145 = vmatpush1.bf16.msra.mxu0 0
    %146 = vmatprep.subr.bf16.mxu0 0
    %147 = vmatpush1.bf16.msra.mxu0 0
    %148 = vmatprep.subr.bf16.mxu0 0
    %149 = vmatpush1.bf16.msra.mxu0 0
    %150 = vmatprep.mubr.bf16.mxu0 0
    %151 = vmatmul.mubr.bf16.gmra.mrb[0].mxu0 %v116
    %v152 = vpop.f32.mrb[0].mxu0
    %v153 = vadd.f32 0.0, %v152
    %v154 = vpop.f32.mrb[0].mxu0
    %v155 = vpop.f32.mrb[0].mxu0
    %v156 = vadd.f32 0.0, %v155
    %v157 = vpop.f32.mrb[0].mxu0
    %158 = vdwg.mxu0
    %v161 = vunpack.c.l.s4 1966171168
    %v162 = vunpack.c.0.s8 %v161
    %v163 = vlaneseq
    %v164 = vshrl.u32 %v163, 7
    %v165 = vsub.s32 %v162, %v164
    %v166 = vrot.slane %v98, %v165
    %v167 = vcombine.high %v166, %v166
    %v169 = vunpack.c.l.s4 1966171168
    %v170 = vunpack.c.0.s8 %v169
    %v171 = vlaneseq
    %v172 = vshrl.u32 %v171, 7
    %v173 = vsub.s32 %v170, %v172
    %v174 = vrot.slane %v166, %v173
    %v176 = vunpack.c.l.s4 1966171168
    %v177 = vunpack.c.0.s8 %v176
    %v178 = vlaneseq
    %v179 = vshrl.u32 %v178, 7
    %v180 = vsub.s32 %v177, %v179
    %v181 = vrot.slane %v167, %v180
    %v182 = vlaneseq
    %v183 = vshrl.u32 %v182, 7
    %v184 = vsub.s32 0, %v183
    %v185 = vrot.slane %v174, %v184
    %v186 = vlaneseq
    %v187 = vshrl.u32 %v186, 7
    %v188 = vsub.s32 0, %v187
    %v189 = vrot.slane %v181, %v188
    %v192 = vadd.f32 %v153, %v185
    %v193 = vadd.f32 %v156, %v189
    %v194 = vmax.f32 %v192, 0.0
    %v195 = vmax.f32 %v193, 0.0
    %v196 = vpack.c.bf16 %v195, %v194
    %v197 = vld [vmem:[%s5] sm:$0xf]
    %v198 = vld [vmem:[%s5 + $0x4] sm:$0xf]
    %v199 = vld [vmem:[%s5 + $0x8] sm:$0xf]
    %v200 = vld [vmem:[%s5 + $0xc] sm:$0xf]
    %v201 = vld [vmem:[%s5 + $0x10] sm:$0xf]
    %v202 = vld [vmem:[%s5 + $0x14] sm:$0xf]
    %v203 = vld [vmem:[%s5 + $0x18] sm:$0xf]
    %v204 = vld [vmem:[%s5 + $0x1c] sm:$0xf]
    %v205 = vld [vmem:[%s6] sm:$0x1]
    %v207 = vlaneseq
    %v208 = vshrl.u32 %v207, 7
    %v209 = vsub.s32 0, %v208
    %v210 = vrot.slane %v205, %v209
    %v220 = vunpack.c.l.b16 %v197
    %v221 = vunpack.c.l.b16 %v198
    %v222 = vunpack.c.l.b16 %v199
    %v223 = vunpack.c.l.b16 %v200
    %v224 = vunpack.c.l.b16 %v201
    %v225 = vunpack.c.l.b16 %v202
    %v226 = vunpack.c.l.b16 %v203
    %v227 = vunpack.c.l.b16 %v204
    %v228 = vpack.c.b16 %v221, %v220
    %v229 = vpack.c.b16 %v223, %v222
    %v230 = vpack.c.b16 %v225, %v224
    %v231 = vpack.c.b16 %v227, %v226
    %vm236 = vcmask 523264
    %v238 = vsel %vm236, %v196, 0
    %240 = vmatprep.subr.bf16.mxu0 0
    %241 = vmatpush1.bf16.msra.mxu0 %v228
    %242 = vmatprep.subr.bf16.mxu0 0
    %243 = vmatpush1.bf16.msra.mxu0 %v229
    %244 = vmatprep.subr.bf16.mxu0 0
    %245 = vmatpush1.bf16.msra.mxu0 %v230
    %246 = vmatprep.subr.bf16.mxu0 0
    %247 = vmatpush1.bf16.msra.mxu0 %v231
    %248 = vmatprep.subr.bf16.mxu0 0
    %249 = vmatpush1.bf16.msra.mxu0 0
    %250 = vmatprep.subr.bf16.mxu0 0
    %251 = vmatpush1.bf16.msra.mxu0 0
    %252 = vmatprep.subr.bf16.mxu0 0
    %253 = vmatpush1.bf16.msra.mxu0 0
    %254 = vmatprep.subr.bf16.mxu0 0
    %255 = vmatpush1.bf16.msra.mxu0 0
    %256 = vmatprep.subr.bf16.mxu0 0
    %257 = vmatpush1.bf16.msra.mxu0 0
    %258 = vmatprep.subr.bf16.mxu0 0
    %259 = vmatpush1.bf16.msra.mxu0 0
    %260 = vmatprep.subr.bf16.mxu0 0
    %261 = vmatpush1.bf16.msra.mxu0 0
    %262 = vmatprep.subr.bf16.mxu0 0
    %263 = vmatpush1.bf16.msra.mxu0 0
    %264 = vmatprep.subr.bf16.mxu0 0
    %265 = vmatpush1.bf16.msra.mxu0 0
    %266 = vmatprep.subr.bf16.mxu0 0
    %267 = vmatpush1.bf16.msra.mxu0 0
    %268 = vmatprep.subr.bf16.mxu0 0
    %269 = vmatpush1.bf16.msra.mxu0 0
    %270 = vmatprep.subr.bf16.mxu0 0
    %271 = vmatpush1.bf16.msra.mxu0 0
    %272 = vmatprep.mubr.bf16.mxu0 0
    %273 = vmatmul.mubr.bf16.gmra.mrb[0].mxu0 %v238
    %v274 = vpop.f32.mrb[0].mxu0
    %v275 = vadd.f32 %v210, %v274
    %v276 = vpop.f32.mrb[0].mxu0
    %v277 = vpop.f32.mrb[0].mxu0
    %v278 = vadd.f32 %v210, %v277
    %v279 = vpop.f32.mrb[0].mxu0
    %280 = vdwg.mxu0
    %v281 = vmax.f32 %v275, 0.0
    %v282 = vmax.f32 %v278, 0.0
    %v283 = vpack.c.bf16 %v282, %v281
    %v284 = vld [vmem:[%s7] sm:$0xf]
    %v285 = vld [vmem:[%s7 + $0x4] sm:$0xf]
    %v286 = vld [vmem:[%s7 + $0x8] sm:$0xf]
    %v287 = vld [vmem:[%s7 + $0xc] sm:$0xf]
    %v288 = vld [vmem:[%s7 + $0x10] sm:$0xf]
    %v289 = vld [vmem:[%s7 + $0x14] sm:$0xf]
    %v290 = vld [vmem:[%s7 + $0x18] sm:$0xf]
    %v291 = vld [vmem:[%s7 + $0x1c] sm:$0xf]
    %v292 = vld [vmem:[%s8] sm:$0x1]
    %v294 = vlaneseq
    %v295 = vshrl.u32 %v294, 7
    %v296 = vsub.s32 0, %v295
    %v297 = vrot.slane %v292, %v296
    %v307 = vunpack.c.l.b16 %v284
    %v308 = vunpack.c.l.b16 %v285
    %v309 = vunpack.c.l.b16 %v286
    %v310 = vunpack.c.l.b16 %v287
    %v311 = vunpack.c.l.b16 %v288
    %v312 = vunpack.c.l.b16 %v289
    %v313 = vunpack.c.l.b16 %v290
    %v314 = vunpack.c.l.b16 %v291
    %v315 = vpack.c.b16 %v308, %v307
    %v316 = vpack.c.b16 %v310, %v309
    %v317 = vpack.c.b16 %v312, %v311
    %v318 = vpack.c.b16 %v314, %v313
    %v324 = vsel %vm236, %v283, 0
    %326 = vmatprep.subr.bf16.mxu0 0
    %327 = vmatpush1.bf16.msra.mxu0 %v315
    %328 = vmatprep.subr.bf16.mxu0 0
    %329 = vmatpush1.bf16.msra.mxu0 %v316
    %330 = vmatprep.subr.bf16.mxu0 0
    %331 = vmatpush1.bf16.msra.mxu0 %v317
    %332 = vmatprep.subr.bf16.mxu0 0
    %333 = vmatpush1.bf16.msra.mxu0 %v318
    %334 = vmatprep.subr.bf16.mxu0 0
    %335 = vmatpush1.bf16.msra.mxu0 0
    %336 = vmatprep.subr.bf16.mxu0 0
    %337 = vmatpush1.bf16.msra.mxu0 0
    %338 = vmatprep.subr.bf16.mxu0 0
    %339 = vmatpush1.bf16.msra.mxu0 0
    %340 = vmatprep.subr.bf16.mxu0 0
    %341 = vmatpush1.bf16.msra.mxu0 0
    %342 = vmatprep.subr.bf16.mxu0 0
    %343 = vmatpush1.bf16.msra.mxu0 0
    %344 = vmatprep.subr.bf16.mxu0 0
    %345 = vmatpush1.bf16.msra.mxu0 0
    %346 = vmatprep.subr.bf16.mxu0 0
    %347 = vmatpush1.bf16.msra.mxu0 0
    %348 = vmatprep.subr.bf16.mxu0 0
    %349 = vmatpush1.bf16.msra.mxu0 0
    %350 = vmatprep.subr.bf16.mxu0 0
    %351 = vmatpush1.bf16.msra.mxu0 0
    %352 = vmatprep.subr.bf16.mxu0 0
    %353 = vmatpush1.bf16.msra.mxu0 0
    %354 = vmatprep.subr.bf16.mxu0 0
    %355 = vmatpush1.bf16.msra.mxu0 0
    %356 = vmatprep.subr.bf16.mxu0 0
    %357 = vmatpush1.bf16.msra.mxu0 0
    %358 = vmatprep.mubr.bf16.mxu0 0
    %359 = vmatmul.mubr.bf16.gmra.mrb[0].mxu0 %v324
    %v360 = vpop.f32.mrb[0].mxu0
    %v361 = vadd.f32 %v297, %v360
    %v362 = vpop.f32.mrb[0].mxu0
    %v363 = vpop.f32.mrb[0].mxu0
    %v364 = vadd.f32 %v297, %v363
    %v365 = vpop.f32.mrb[0].mxu0
    %366 = vdwg.mxu0
    %367 = vst.msk [vmem:[#allocation2] sm:$0xff] %vm59, %v361
    %368 = vst.msk [vmem:[#allocation2 + $0x8] sm:$0xff] %vm59, %v364
    // Predicated region
    $region38: #{user_item_scorer_forward.1} parent=1 // pred_check
      _
    $region39: #{user_item_scorer_forward.1} parent=1 // pred_check_branch
      %370 = sbr.rel (0) target = $region41
    $region40: #{user_item_scorer_forward.1} parent=1 // pred_region
      %s372 = ssub.s32 256, 256
      %373 = vsyncadd [#allocation3], %s372
      %s374 = sshll.u32 [#allocation2], 4
      %s375 = int_to_ptr.vmem [resolvable:$true] %s374
      %380 = dma.vmem_to_hbm [thread:$0]  %s375, 256, %s9, [#allocation3], 128, 128, 8
    $region41: #{user_item_scorer_forward.1} parent=1 // pred_fallthru
      _
    // Predicated region
    $region42: #{user_item_scorer_forward.1} parent=1 // pred_check
      _
    $region43: #{user_item_scorer_forward.1} parent=1 // pred_check_branch
      %382 = sbr.rel (0) target = $region45
    $region44: #{user_item_scorer_forward.1} parent=1 // pred_region
      %383 = dma.done [#allocation3], 256
    $region45: #{user_item_scorer_forward.1} parent=1 // pred_fallthru
      _
    %384 = vsyncpa [#allocation3], 1

</llo_original>
